<compile_context>
chip_gen: v6e
topology: v6e:2x2x1
jax: 0.10.0
libtpu: 0.0.40
codegen_flags: <defaults>
</compile_context>

<pallas_src>
import functools
import math

import jax
import jax.numpy as jnp
from jax.experimental import pallas as pl
from jax.experimental.pallas import tpu as pltpu

P_DROP = 0.1597118722272973                     # torch.nn.Dropout p from the module
_DROP_THRESH = int(round(P_DROP * (1 << 32)))   # uint32 threshold: bits < thresh -> drop


def _round_up(n, m):
    return (n + m - 1) // m * m


def _padded_dims(L, D, l_tile=128):
    kp = _round_up(max(D, 128), 128)            # lane-dense key/feature axis
    lt = min(l_tile, _round_up(L, 8))           # query-tile rows (sublane multiple)
    lp = _round_up(L, lt)
    return lp, lt, kp


def _sdpa_kernel(x1_ref, x2_ref, bits_ref, o_ref, *, d_orig, s_valid):
    x1 = x1_ref[0]            # (Lt, Kp) fp32  query rows, zero-padded features
    x2 = x2_ref[0]            # (Kp, Kp) fp32  zero-padded keys x features
    lt, kp = x1.shape

    # additive mask comes from the RAW x1 values (torch: -1e7 * (x1 == -1))
    add_mask = jnp.where(x1 == jnp.float32(-1.0),
                         jnp.float32(-1e7), jnp.float32(0.0))

    # fold 1/sqrt(D) into x1 (L*D muls instead of L*S)
    x1s = x1 * jnp.float32(1.0 / math.sqrt(d_orig))

    # scores = x1s @ x2^T  -> (Lt, Kp), contract the feature axis
    s = jax.lax.dot_general(x1s, x2, (((1,), (1,)), ((), ())),
                            preferred_element_type=jnp.float32)
    s = s + add_mask

    # knock out zero-padded key columns so they never enter the softmax
    col = jax.lax.broadcasted_iota(jnp.int32, (lt, kp), 1)
    s = jnp.where(col < s_valid, s, jnp.float32(-1e30))

    # softmax numerator; the denominator is deferred past the second matmul
    m = jnp.max(s, axis=-1, keepdims=True)
    e = jnp.exp(s - m)
    denom = jnp.sum(e, axis=-1, keepdims=True)            # (Lt, 1)

    # dropout: integer-threshold compare on precomputed uint32 bits
    keep = bits_ref[0] >= jnp.uint32(_DROP_THRESH)
    ed = jnp.where(keep, e, jnp.float32(0.0))

    # out = (kept, unnormalized probs) @ x2, then one fused per-row scaling
    out = jnp.dot(ed, x2, preferred_element_type=jnp.float32)   # (Lt, Kp)
    out = out * (jnp.float32(1.0 / (1.0 - P_DROP)) / denom)
    o_ref[0] = out.astype(o_ref.dtype)


def sdpa_pallas(x1, x2, *, dropout_key, l_tile=128):
    B, L, D = x1.shape
    Bk, S, Dk = x2.shape
    assert B == Bk and D == Dk
    # the torch module broadcasts an (L, D) mask onto (L, S) scores -> needs D == S
    assert S == D, "mask (x1 == -1) broadcast requires x1 feature dim == x2 key-seq dim"

    lp, lt, kp = _padded_dims(L, D, l_tile)

    x1p = jnp.pad(x1, ((0, 0), (0, lp - L), (0, kp - D)))
    x2p = jnp.pad(x2, ((0, 0), (0, kp - S), (0, kp - D)))

    # TODO(synk): in a TPU-only deployment generate these inside the kernel with
    # pltpu.prng_seed/prng_random_bits (seeded per (batch, l_tile)) instead of
    # streaming a (B, L, S) bits array from HBM; kept host-side here because the
    # TPU stateful-PRNG primitives have no interpret-mode lowering.
    bits = jax.random.bits(dropout_key, (B, lp, kp), dtype=jnp.uint32)

    kernel = functools.partial(_sdpa_kernel, d_orig=D, s_valid=S)
    n_lt = lp // lt

    out = pl.pallas_call(
        kernel,
        out_shape=jax.ShapeDtypeStruct((B, lp, kp), x1.dtype),
        grid=(B, n_lt),
        in_specs=[
            pl.BlockSpec((1, lt, kp), lambda b, l: (b, l, 0)),
            pl.BlockSpec((1, kp, kp), lambda b, l: (b, 0, 0)),   # resident per batch
            pl.BlockSpec((1, lt, kp), lambda b, l: (b, l, 0)),
        ],
        out_specs=pl.BlockSpec((1, lt, kp), lambda b, l: (b, l, 0)),
        compiler_params=pltpu.CompilerParams(
            dimension_semantics=("parallel", "parallel"),
            vmem_limit_bytes=48 * 1024 * 1024,
        ),
    )(x1p, x2p, bits)

    return out[:, :L, :D]


def _reference(x1, x2, bits):
    """Pure-JAX mirror of the torch forward, reusing the same dropout bits."""
    B, L, D = x1.shape
    S = x2.shape[1]
    s = jnp.einsum("bld,bsd->bls", x1, x2) / math.sqrt(D)
    s = s + jnp.float32(-1e7) * (x1 == -1.0).astype(jnp.float32)
    p = jax.nn.softmax(s, axis=-1)
    keep = bits[:, :L, :S] >= jnp.uint32(_DROP_THRESH)
    p = jnp.where(keep, p / (1.0 - P_DROP), 0.0)
    return jnp.einsum("bls,bsd->bld", p, x2)


if __name__ == "__main__":
    key = jax.random.PRNGKey(0)
    k1, k2, k3 = jax.random.split(key, 3)
    # Small shapes consistent with the module's pattern, chosen so the matmul and
    # the (x1 == -1) mask broadcast are shape-consistent (D == S):
    B, L, S, D = 2, 16, 32, 32
    x1 = jax.random.normal(k1, (B, L, D), dtype=jnp.float32)
    x2 = jax.random.normal(k2, (B, S, D), dtype=jnp.float32)

    out = sdpa_pallas(x1, x2, dropout_key=k3)
    jax.block_until_ready(out)
    assert out.shape == (B, L, D) and out.dtype == jnp.float32
    assert bool(jnp.all(jnp.isfinite(out)))

    # numerical check against a pure-JAX mirror using the identical dropout bits
    lp, lt, kp = _padded_dims(L, D, l_tile=128)
    bits = jax.random.bits(k3, (B, lp, kp), dtype=jnp.uint32)
    ref = _reference(x1, x2, bits)
    assert jnp.allclose(out, ref, rtol=2e-3, atol=2e-3), \
        float(jnp.max(jnp.abs(out - ref)))

    print("KERNEL_OK")
</pallas_src>

<mosaic_0001>
module attributes {stable_mosaic.version = 11 : i64} {
  func.func @_sdpa_kernel(%arg0: i32, %arg1: i32, %arg2: memref<1x16x128xf32, #tpu.memory_space<vmem>>, %arg3: memref<1x128x128xf32, #tpu.memory_space<vmem>>, %arg4: memref<1x16x128xi32, #tpu.memory_space<vmem>>, %arg5: memref<1x16x128xf32, #tpu.memory_space<vmem>>) attributes {dimension_semantics = [#tpu.dimension_semantics<parallel>, #tpu.dimension_semantics<parallel>], iteration_bounds = array<i64: 2, 1>, scalar_prefetch = 0 : i64, scratch_operands = 0 : i64, tpu.core_type = #tpu.core_type<tc>, window_params = [{transform_indices = @transform_0, window_bounds = array<i64: 1, 16, 128>}, {transform_indices = @transform_1, window_bounds = array<i64: 1, 128, 128>}, {transform_indices = @transform_2, window_bounds = array<i64: 1, 16, 128>}, {transform_indices = @transform_3, window_bounds = array<i64: 1, 16, 128>}]} {
    %c0 = arith.constant 0 : index
    %c0_0 = arith.constant 0 : index
    %c0_1 = arith.constant 0 : index
    %0 = vector.load %arg2[%c0, %c0_0, %c0_1] : memref<1x16x128xf32, #tpu.memory_space<vmem>>, vector<1x16x128xf32>
    %1 = vector.shape_cast %0 : vector<1x16x128xf32> to vector<16x128xf32>
    %c0_2 = arith.constant 0 : index
    %c0_3 = arith.constant 0 : index
    %c0_4 = arith.constant 0 : index
    %2 = vector.load %arg3[%c0_2, %c0_3, %c0_4] : memref<1x128x128xf32, #tpu.memory_space<vmem>>, vector<1x128x128xf32>
    %3 = vector.shape_cast %2 : vector<1x128x128xf32> to vector<128x128xf32>
    %cst = arith.constant -1.000000e+00 : f32
    %4 = vector.broadcast %cst : f32 to vector<16x128xf32>
    %5 = arith.cmpf oeq, %1, %4 : vector<16x128xf32>
    %cst_5 = arith.constant -1.000000e+07 : f32
    %cst_6 = arith.constant 0.000000e+00 : f32
    %6 = vector.broadcast %cst_5 : f32 to vector<16x128xf32>
    %7 = vector.broadcast %cst_6 : f32 to vector<16x128xf32>
    %8 = arith.select %5, %6, %7 : vector<16x128xi1>, vector<16x128xf32>
    %cst_7 = arith.constant 0.176776692 : f32
    %9 = vector.broadcast %cst_7 : f32 to vector<16x128xf32>
    %10 = arith.mulf %1, %9 : vector<16x128xf32>
    %cst_8 = arith.constant dense<0.000000e+00> : vector<16x128xf32>
    %11 = tpu.matmul %10, %3, %cst_8 {dimension_numbers = #tpu.dot_dimension_numbers<[1], [1], [0], [0], [0, 0, 1, 0], [], []>} : vector<16x128xf32>, vector<128x128xf32>, vector<16x128xf32> -> vector<16x128xf32>
    %12 = arith.addf %11, %8 : vector<16x128xf32>
    %13 = tpu.iota {dimensions = array<i32: 1>} : vector<16x128xi32>
    %c32_i32 = arith.constant 32 : i32
    %14 = vector.broadcast %c32_i32 : i32 to vector<16x128xi32>
    %15 = arith.cmpi slt, %13, %14 : vector<16x128xi32>
    %cst_9 = arith.constant -1.000000e+30 : f32
    %16 = vector.broadcast %cst_9 : f32 to vector<16x128xf32>
    %17 = arith.select %15, %12, %16 : vector<16x128xi1>, vector<16x128xf32>
    %cst_10 = arith.constant dense<0xFF800000> : vector<16xf32>
    %18 = vector.multi_reduction <maximumf>, %17, %cst_10 [1] : vector<16x128xf32> to vector<16xf32>
    %19 = vector.shape_cast %18 : vector<16xf32> to vector<16x1xf32>
    %20 = vector.broadcast %19 : vector<16x1xf32> to vector<16x128xf32>
    %21 = arith.subf %17, %20 : vector<16x128xf32>
    %22 = math.exp %21 : vector<16x128xf32>
    %cst_11 = arith.constant dense<0.000000e+00> : vector<16xf32>
    %23 = vector.multi_reduction <add>, %22, %cst_11 [1] : vector<16x128xf32> to vector<16xf32>
    %24 = vector.shape_cast %23 : vector<16xf32> to vector<16x1xf32>
    %c0_12 = arith.constant 0 : index
    %c0_13 = arith.constant 0 : index
    %c0_14 = arith.constant 0 : index
    %25 = vector.load %arg4[%c0_12, %c0_13, %c0_14] : memref<1x16x128xi32, #tpu.memory_space<vmem>>, vector<1x16x128xi32>
    %26 = vector.shape_cast %25 : vector<1x16x128xi32> to vector<16x128xi32>
    %c685957268_i32 = arith.constant 685957268 : i32
    %27 = vector.broadcast %c685957268_i32 : i32 to vector<16x128xi32>
    %28 = arith.cmpi uge, %26, %27 : vector<16x128xi32>
    %cst_15 = arith.constant 0.000000e+00 : f32
    %29 = vector.broadcast %cst_15 : f32 to vector<16x128xf32>
    %30 = arith.select %28, %22, %29 : vector<16x128xi1>, vector<16x128xf32>
    %cst_16 = arith.constant dense<0.000000e+00> : vector<16x128xf32>
    %31 = tpu.matmul %30, %3, %cst_16 {dimension_numbers = #tpu.dot_dimension_numbers<[1], [0], [0], [1], [0, 0, 1, 1], [], []>} : vector<16x128xf32>, vector<128x128xf32>, vector<16x128xf32> -> vector<16x128xf32>
    %cst_17 = arith.constant 1.19006801 : f32
    %32 = vector.broadcast %cst_17 : f32 to vector<16x1xf32>
    %33 = arith.divf %32, %24 : vector<16x1xf32>
    %34 = vector.broadcast %33 : vector<16x1xf32> to vector<16x128xf32>
    %35 = arith.mulf %31, %34 : vector<16x128xf32>
    %c0_18 = arith.constant 0 : index
    %c0_19 = arith.constant 0 : index
    %c0_20 = arith.constant 0 : index
    %36 = vector.load %arg5[%c0_18, %c0_19, %c0_20] : memref<1x16x128xf32, #tpu.memory_space<vmem>>, vector<1x16x128xf32>
    %37 = vector.shape_cast %36 : vector<1x16x128xf32> to vector<16x128xf32>
    %38 = vector.shape_cast %35 : vector<16x128xf32> to vector<1x16x128xf32>
    tpu.vector_store %arg5[%c0_18, %c0_19, %c0_20], %38 {strides = array<i32>} : memref<1x16x128xf32, #tpu.memory_space<vmem>>, vector<1x16x128xf32>,
    return
  }
  func.func @transform_0(%arg0: i32, %arg1: i32) -> (i32, i32, i32) {
    %c0_i32 = arith.constant 0 : i32
    %c0_i32_0 = arith.constant 0 : i32
    return %arg0, %arg1, %c0_i32 : i32, i32, i32
  }
  func.func @transform_1(%arg0: i32, %arg1: i32) -> (i32, i32, i32) {
    %c0_i32 = arith.constant 0 : i32
    %c0_i32_0 = arith.constant 0 : i32
    %c0_i32_1 = arith.constant 0 : i32
    return %arg0, %c0_i32, %c0_i32_0 : i32, i32, i32
  }
  func.func @transform_2(%arg0: i32, %arg1: i32) -> (i32, i32, i32) {
    %c0_i32 = arith.constant 0 : i32
    %c0_i32_0 = arith.constant 0 : i32
    return %arg0, %arg1, %c0_i32 : i32, i32, i32
  }
  func.func @transform_3(%arg0: i32, %arg1: i32) -> (i32, i32, i32) {
    %c0_i32 = arith.constant 0 : i32
    %c0_i32_0 = arith.constant 0 : i32
    return %arg0, %arg1, %c0_i32 : i32, i32, i32
  }
}

</mosaic_0001>

<llo_original>
// kernel: tpu_custom_call.1
$region0: #{tpu_custom_call.1}
  #allocation0 [shape = 'u32[]', space=smem, size = 0x4, offset = 0x4, fixed_abs, tag = 'smem constant byte address 0x4 - core index']
  #allocation1 [shape = 'u32[144,128]{1,0:T(1,128)}', space=vmem, size = 0x12000, scoped, tag = 'internal scratch']
  %s0 = inlined_call_operand.hbm [shape: f32[2,16,128], index: 0, kind: input, shape index: {}]
  %s1 = inlined_call_operand.hbm [shape: f32[2,128,128], index: 1, kind: input, shape index: {}]
  %s2 = inlined_call_operand.hbm [shape: u32[2,16,128], index: 2, kind: input, shape index: {}]
  %s3 = inlined_call_operand.hbm [shape: f32[2,16,128], index: 3, kind: output, shape index: {}]
  %s4 = sld [smem:[#allocation0]]
  $region57: #{tpu_custom_call.1} parent=0
    _
  %s6 = ssub.s32 1, %s4
  %s7 = scalar_select 0, %s6, %s4
  $region1: #{tpu_custom_call.1} parent=0
    #allocation2 [shape = 'u8[16384]{0}', space=vmem, size = 0x4000, scoped, tag = 'input window, operand 0']
    #allocation3 [shape = 's32[2]{0}', space=sflag, size = 0x8, scoped, tag = 'scoped memory for tpu_custom_call.1']
    #allocation4 [shape = 's32[2]{0}', space=sflag, size = 0x8, scoped, tag = 'scoped memory for tpu_custom_call.1']
    #allocation5 [shape = 'u8[131072]{0}', space=vmem, size = 0x20000, scoped, tag = 'input window, operand 1']
    #allocation6 [shape = 's32[2]{0}', space=sflag, size = 0x8, scoped, tag = 'scoped memory for tpu_custom_call.1']
    #allocation7 [shape = 'u8[16384]{0}', space=vmem, size = 0x4000, scoped, tag = 'input window, operand 2']
    #allocation8 [shape = 'u8[16384]{0}', space=vmem, size = 0x4000, scoped, tag = 'output window, operand 0']
    %8 = vsyncpa [#allocation3], 0
    %s9 = scalar_lea.sflag [#allocation3], 1
    %10 = vsyncpa %s9, 0
    %11 = vsyncpa [#allocation6], 0
    %s12 = scalar_lea.sflag [#allocation6], 1
    %13 = vsyncpa %s12, 0
    %14 = vsyncpa [#allocation4], 0
    %s15 = scalar_lea.sflag [#allocation4], 1
    %16 = vsyncpa %s15, 0
    loop: start=0, step=1, limit=4
    $region2: #{tpu_custom_call.1} parent=1 // loop_pre_header
      _
    $region3: #{tpu_custom_call.1} parent=1 // loop_header
      %s18 = sphi 0, %s22
      %p19 = scmp.ge.s32.totalorder %s18, 4
      %s25 = sphi 0, %s37
      %s26 = sphi 0, %s33
      %s27 = sphi 0, %s25
      %s28 = sphi 0, %s26
      %s29 = sphi 0, %s27
      %s30 = sphi 0, %s28
      %s42 = sphi 0, %s44
      %s45 = sphi 0, %s42
      %s46 = sphi 0, %s45
      %s62 = sphi 0, %s46
      %s68 = sphi 0, %s70
      %s71 = sphi 0, %s68
      %s72 = sphi 0, %s71
      %s88 = sphi 0, %s72
      %s96 = sphi 0, %s98
      %s99 = sphi 0, %s96
      %s100 = sphi 0, %s99
      %s116 = sphi 0, %s100
      %s124 = sphi 0, %s126
      %s127 = sphi 0, %s124
      %s128 = sphi 0, %s127
      %s144 = sphi 0, %s128
    $region4: #{tpu_custom_call.1} parent=1 // loop_header_branch
      %21 = sbr.rel (%p19) target = $region8
    $region5: #{tpu_custom_call.1} parent=1 // loop_body
      %s23 = ssub.s32 %s18, 1
      %s24 = ssub.s32 %s18, 2
      %s31 = sadd.s32 1, %s26
      %p32 = scmp.ge.s32.totalorder %s31, 1
      %s33 = scalar_select %p32, 0, %s31
      %s34 = sadd.s32 1, %s25
      %s35 = scalar_select %p32, %s34, %s25
      %p36 = scmp.ge.s32.totalorder %s35, 2
      %s37 = scalar_select %p36, 0, %s35
      %s38 = ssub.s32 %s25, %s37
      %s39 = ssub.s32 %s26, %s33
      %s40 = sor.u32 %s38, %s39
      %p41 = scmp.eq.s32.totalorder %s40, 0
      %s43 = sadd.s32 %s42, 1
      %s44 = scalar_select %p41, %s42, %s43
      %p47 = pneg %p41
      %p48 = scmp.eq.s32.totalorder %s18, 1
      %p49 = por %p47, %p48
      %p50 = scmp.ne.s32.totalorder %s42, %s45
      %p51 = scmp.eq.s32.totalorder %s18, 0
      %p52 = por %p50, %p51
      %p53 = scmp.ne.s32.totalorder %s42, %s45
      %p54 = scmp.eq.s32.totalorder %s23, 1
      %p55 = por %p53, %p54
      %p56 = scmp.ne.s32.totalorder %s45, %s46
      %p57 = scmp.eq.s32.totalorder %s23, 0
      %p58 = por %p56, %p57
      %p59 = scmp.ne.s32.totalorder %s45, %s46
      %p60 = scmp.eq.s32.totalorder %s24, 1
      %p61 = por %p59, %p60
      %p63 = scmp.ne.s32.totalorder %s46, %s62
      %p64 = scmp.eq.s32.totalorder %s24, 0
      %p65 = por %p63, %p64
      %s66 = ssub.s32 %s25, %s37
      %p67 = scmp.eq.s32.totalorder %s66, 0
      %s69 = sadd.s32 %s68, 1
      %s70 = scalar_select %p67, %s68, %s69
      %p73 = pneg %p67
      %p74 = scmp.eq.s32.totalorder %s18, 1
      %p75 = por %p73, %p74
      %p76 = scmp.ne.s32.totalorder %s68, %s71
      %p77 = scmp.eq.s32.totalorder %s18, 0
      %p78 = por %p76, %p77
      %p79 = scmp.ne.s32.totalorder %s68, %s71
      %p80 = scmp.eq.s32.totalorder %s23, 1
      %p81 = por %p79, %p80
      %p82 = scmp.ne.s32.totalorder %s71, %s72
      %p83 = scmp.eq.s32.totalorder %s23, 0
      %p84 = por %p82, %p83
      %p85 = scmp.ne.s32.totalorder %s71, %s72
      %p86 = scmp.eq.s32.totalorder %s24, 1
      %p87 = por %p85, %p86
      %p89 = scmp.ne.s32.totalorder %s72, %s88
      %p90 = scmp.eq.s32.totalorder %s24, 0
      %p91 = por %p89, %p90
      %s92 = ssub.s32 %s25, %s37
      %s93 = ssub.s32 %s26, %s33
      %s94 = sor.u32 %s92, %s93
      %p95 = scmp.eq.s32.totalorder %s94, 0
      %s97 = sadd.s32 %s96, 1
      %s98 = scalar_select %p95, %s96, %s97
      %p101 = pneg %p95
      %p102 = scmp.eq.s32.totalorder %s18, 1
      %p103 = por %p101, %p102
      %p104 = scmp.ne.s32.totalorder %s96, %s99
      %p105 = scmp.eq.s32.totalorder %s18, 0
      %p106 = por %p104, %p105
      %p107 = scmp.ne.s32.totalorder %s96, %s99
      %p108 = scmp.eq.s32.totalorder %s23, 1
      %p109 = por %p107, %p108
      %p110 = scmp.ne.s32.totalorder %s99, %s100
      %p111 = scmp.eq.s32.totalorder %s23, 0
      %p112 = por %p110, %p111
      %p113 = scmp.ne.s32.totalorder %s99, %s100
      %p114 = scmp.eq.s32.totalorder %s24, 1
      %p115 = por %p113, %p114
      %p117 = scmp.ne.s32.totalorder %s100, %s116
      %p118 = scmp.eq.s32.totalorder %s24, 0
      %p119 = por %p117, %p118
      %s120 = ssub.s32 %s25, %s37
      %s121 = ssub.s32 %s26, %s33
      %s122 = sor.u32 %s120, %s121
      %p123 = scmp.eq.s32.totalorder %s122, 0
      %s125 = sadd.s32 %s124, 1
      %s126 = scalar_select %p123, %s124, %s125
      %p129 = pneg %p123
      %p130 = scmp.eq.s32.totalorder %s18, 1
      %p131 = por %p129, %p130
      %p132 = scmp.ne.s32.totalorder %s124, %s127
      %p133 = scmp.eq.s32.totalorder %s18, 0
      %p134 = por %p132, %p133
      %p135 = scmp.ne.s32.totalorder %s124, %s127
      %p136 = scmp.eq.s32.totalorder %s23, 1
      %p137 = por %p135, %p136
      %p138 = scmp.ne.s32.totalorder %s127, %s128
      %p139 = scmp.eq.s32.totalorder %s23, 0
      %p140 = por %p138, %p139
      %p141 = scmp.ne.s32.totalorder %s127, %s128
      %p142 = scmp.eq.s32.totalorder %s24, 1
      %p143 = por %p141, %p142
      %p145 = scmp.ne.s32.totalorder %s128, %s144
      %p146 = scmp.eq.s32.totalorder %s24, 0
      %p147 = por %p145, %p146
      %p148 = scmp.le.s32.totalorder 1, %s18
      %p149 = scmp.lt.s32.totalorder %s18, 3
      %p150 = pnand %p148, %p149
      %p151 = pneg %p150
      // Predicated region
      $region9: #{tpu_custom_call.1} parent=5 // pred_check
        _
      $region10: #{tpu_custom_call.1} parent=5 // pred_check_branch
        %153 = sbr.rel (%p150) target = $region12
      $region11: #{tpu_custom_call.1} parent=5 // pred_region
        %s154 = ssub.s32 %s18, 1
      $region12: #{tpu_custom_call.1} parent=5 // pred_fallthru
        _
      %p155 = scmp.lt.s32.totalorder %s18, 2
      // Predicated region
      $region13: #{tpu_custom_call.1} parent=5 // pred_check
        %p156 = pneg %p155
      $region14: #{tpu_custom_call.1} parent=5 // pred_check_branch
        %158 = sbr.rel (%p156) target = $region16
      $region15: #{tpu_custom_call.1} parent=5 // pred_region
        // Predicated region
        $region17: #{tpu_custom_call.1} parent=15 // pred_check
          %p159 = pneg %p52
        $region18: #{tpu_custom_call.1} parent=15 // pred_check_branch
          %161 = sbr.rel (%p159) target = $region20
        $region19: #{tpu_custom_call.1} parent=15 // pred_region
          %s162 = sand.u32 %s42, 1
          %s163 = scalar_lea.sflag [#allocation3], %s162
          %s164 = sand.u32 %s42, 1
          %s165 = smul.addr %s164, 16
          %s166 = scalar_lea.vmem [#allocation2], %s165
          %s167 = smul.u32 2, %s26
          %s169 = ssub.s32 256, 256
          %170 = vsyncadd %s163, %s169
          %s171 = smul.addr %s25, 2
          %s172 = sadd.s32 %s167, %s171
          %s173 = smul.addr %s172, 128
          %s174 = scalar_lea.hbm %s0, %s173
          %s175 = sshll.u32 %s166, 4
          %s176 = int_to_ptr.vmem [resolvable:$true] %s175
          %181 = dma.hbm_to_vmem [thread:$0]  %s174, 256, %s176, %s163, 128, 128, 8
        $region20: #{tpu_custom_call.1} parent=15 // pred_fallthru
          _
        // Predicated region
        $region21: #{tpu_custom_call.1} parent=15 // pred_check
          %p182 = pneg %p78
        $region22: #{tpu_custom_call.1} parent=15 // pred_check_branch
          %184 = sbr.rel (%p182) target = $region24
        $region23: #{tpu_custom_call.1} parent=15 // pred_region
          %s185 = sand.u32 %s18, 1
          %s186 = scalar_lea.sflag [#allocation6], %s185
          %s187 = sand.u32 %s68, 1
          %s188 = smul.addr %s187, 128
          %s189 = scalar_lea.vmem [#allocation5], %s188
          %s191 = ssub.s32 2048, 2048
          %192 = vsyncadd %s186, %s191
          %s193 = smul.addr %s25, 16
          %s194 = smul.addr %s193, 128
          %s195 = scalar_lea.hbm %s1, %s194
          %s196 = sshll.u32 %s189, 4
          %s197 = int_to_ptr.vmem [resolvable:$true] %s196
          %202 = dma.hbm_to_vmem [thread:$0]  %s195, 2048, %s197, %s186, 128, 128, 8
        $region24: #{tpu_custom_call.1} parent=15 // pred_fallthru
          _
        // Predicated region
        $region25: #{tpu_custom_call.1} parent=15 // pred_check
          %p203 = pneg %p106
        $region26: #{tpu_custom_call.1} parent=15 // pred_check_branch
          %205 = sbr.rel (%p203) target = $region28
        $region27: #{tpu_custom_call.1} parent=15 // pred_region
          %s206 = sand.u32 %s18, 1
          %s207 = scalar_lea.sflag [#allocation6], %s206
          %s208 = sand.u32 %s96, 1
          %s209 = smul.addr %s208, 16
          %s210 = scalar_lea.vmem [#allocation7], %s209
          %s211 = smul.u32 2, %s26
          %s213 = ssub.s32 256, 256
          %214 = vsyncadd %s207, %s213
          %s215 = smul.addr %s25, 2
          %s216 = sadd.s32 %s211, %s215
          %s217 = smul.addr %s216, 128
          %s218 = scalar_lea.hbm %s2, %s217
          %s219 = sshll.u32 %s210, 4
          %s220 = int_to_ptr.vmem [resolvable:$true] %s219
          %225 = dma.hbm_to_vmem [thread:$0]  %s218, 256, %s220, %s207, 128, 128, 8
        $region28: #{tpu_custom_call.1} parent=15 // pred_fallthru
          _
      $region16: #{tpu_custom_call.1} parent=5 // pred_fallthru
        _
      %p226 = scmp.le.s32.totalorder 1, %s18
      %p227 = scmp.lt.s32.totalorder %s18, 3
      %p228 = pnand %p226, %p227
      %p229 = pneg %p228
      // Predicated region
      $region29: #{tpu_custom_call.1} parent=5 // pred_check
        _
      $region30: #{tpu_custom_call.1} parent=5 // pred_check_branch
        %231 = sbr.rel (%p228) target = $region32
      $region31: #{tpu_custom_call.1} parent=5 // pred_region
        %s232 = ssub.s32 %s18, 1
        %s233 = sand.u32 %s45, 1
        %s234 = scalar_lea.sflag [#allocation3], %s233
        %s235 = sand.u32 %s45, 1
        %s236 = smul.addr %s235, 16
        %s237 = scalar_lea.vmem [#allocation2], %s236
        // Predicated region
        $region33: #{tpu_custom_call.1} parent=31 // pred_check
          %p238 = pneg %p58
        $region34: #{tpu_custom_call.1} parent=31 // pred_check_branch
          %240 = sbr.rel (%p238) target = $region36
        $region35: #{tpu_custom_call.1} parent=31 // pred_region
          %241 = dma.done %s234, 256
        $region36: #{tpu_custom_call.1} parent=31 // pred_fallthru
          _
        %s242 = sand.u32 %s23, 1
        %s243 = scalar_lea.sflag [#allocation6], %s242
        %s244 = sand.u32 %s71, 1
        %s245 = smul.addr %s244, 128
        %s246 = scalar_lea.vmem [#allocation5], %s245
        // Predicated region
        $region37: #{tpu_custom_call.1} parent=31 // pred_check
          %p247 = pneg %p84
        $region38: #{tpu_custom_call.1} parent=31 // pred_check_branch
          %249 = sbr.rel (%p247) target = $region40
        $region39: #{tpu_custom_call.1} parent=31 // pred_region
          %250 = dma.done %s243, 2048
        $region40: #{tpu_custom_call.1} parent=31 // pred_fallthru
          _
        %s251 = sand.u32 %s23, 1
        %s252 = scalar_lea.sflag [#allocation6], %s251
        %s253 = sand.u32 %s99, 1
        %s254 = smul.addr %s253, 16
        %s255 = scalar_lea.vmem [#allocation7], %s254
        // Predicated region
        $region41: #{tpu_custom_call.1} parent=31 // pred_check
          %p256 = pneg %p112
        $region42: #{tpu_custom_call.1} parent=31 // pred_check_branch
          %258 = sbr.rel (%p256) target = $region44
        $region43: #{tpu_custom_call.1} parent=31 // pred_region
          %259 = dma.done %s252, 256
        $region44: #{tpu_custom_call.1} parent=31 // pred_fallthru
          _
        %s260 = sand.u32 %s45, 1
        %s261 = scalar_lea.sflag [#allocation3], %s260
        %s262 = sand.u32 %s45, 1
        %s263 = smul.addr %s262, 16
        %s264 = scalar_lea.vmem [#allocation2], %s263
        %p265 = pneg %p58
        %p266 = pneg %p55
        %s267 = sand.u32 %s23, 1
        %s268 = scalar_lea.sflag [#allocation6], %s267
        %s269 = sand.u32 %s71, 1
        %s270 = smul.addr %s269, 128
        %s271 = scalar_lea.vmem [#allocation5], %s270
        %p272 = pneg %p84
        %p273 = pneg %p81
        %s274 = sand.u32 %s23, 1
        %s275 = scalar_lea.sflag [#allocation6], %s274
        %s276 = sand.u32 %s99, 1
        %s277 = smul.addr %s276, 16
        %s278 = scalar_lea.vmem [#allocation7], %s277
        %p279 = pneg %p112
        %p280 = pneg %p109
        %p281 = pneg %p140
        %p282 = pneg %p137
        %s283 = sand.u32 %s127, 1
        %s284 = scalar_lea.sflag [#allocation4], %s283
        %s285 = sand.u32 %s127, 1
        %s286 = smul.addr %s285, 16
        %s287 = scalar_lea.vmem [#allocation8], %s286
        %s288 = smul.u32 2, %s28
        %s289 = smul.u32 2, %s28
        %s290 = smul.u32 2, %s28
        %v291 = vld [vmem:[%s237] sm:$0xff]
        %v292 = vld [vmem:[%s237 + $0x8] sm:$0xff]
        %v293 = vld [vmem:[%s246] sm:$0xff]
        %v294 = vld [vmem:[%s246 + $0x8] sm:$0xff]
        %v295 = vld [vmem:[%s246 + $0x10] sm:$0xff]
        %v296 = vld [vmem:[%s246 + $0x18] sm:$0xff]
        %v297 = vld [vmem:[%s246 + $0x20] sm:$0xff]
        %v298 = vld [vmem:[%s246 + $0x28] sm:$0xff]
        %v299 = vld [vmem:[%s246 + $0x30] sm:$0xff]
        %v300 = vld [vmem:[%s246 + $0x38] sm:$0xff]
        %v301 = vld [vmem:[%s246 + $0x40] sm:$0xff]
        %v302 = vld [vmem:[%s246 + $0x48] sm:$0xff]
        %v303 = vld [vmem:[%s246 + $0x50] sm:$0xff]
        %v304 = vld [vmem:[%s246 + $0x58] sm:$0xff]
        %v305 = vld [vmem:[%s246 + $0x60] sm:$0xff]
        %v306 = vld [vmem:[%s246 + $0x68] sm:$0xff]
        %v307 = vld [vmem:[%s246 + $0x70] sm:$0xff]
        %v308 = vld [vmem:[%s246 + $0x78] sm:$0xff]
        %vm309 = vcmp.eq.f32.partialorder %v291, -1.0
        %vm310 = vcmp.eq.f32.partialorder %v292, -1.0
        %v311 = vsel %vm309, -10000000.0, 0.0
        %v312 = vsel %vm310, -10000000.0, 0.0
        %v313 = vmul.f32 %v291, 0.17677669
        %v314 = vmul.f32 %v292, 0.17677669
        %315 = vmatprep.subr.mxu0 0.0
        %316 = vmatpush1.xpose.msra.mxu0 %v308
        %317 = vmatprep.subr.mxu0 0.0
        %318 = vmatpush1.xpose.msra.mxu0 %v307
        %319 = vmatprep.subr.mxu0 0.0
        %320 = vmatpush1.xpose.msra.mxu0 %v306
        %321 = vmatprep.subr.mxu0 0.0
        %322 = vmatpush1.xpose.msra.mxu0 %v305
        %323 = vmatprep.subr.mxu0 0.0
        %324 = vmatpush1.xpose.msra.mxu0 %v304
        %325 = vmatprep.subr.mxu0 0.0
        %326 = vmatpush1.xpose.msra.mxu0 %v303
        %327 = vmatprep.subr.mxu0 0.0
        %328 = vmatpush1.xpose.msra.mxu0 %v302
        %329 = vmatprep.subr.mxu0 0.0
        %330 = vmatpush1.xpose.msra.mxu0 %v301
        %331 = vmatprep.subr.mxu0 0.0
        %332 = vmatpush1.xpose.msra.mxu0 %v300
        %333 = vmatprep.subr.mxu0 0.0
        %334 = vmatpush1.xpose.msra.mxu0 %v299
        %335 = vmatprep.subr.mxu0 0.0
        %336 = vmatpush1.xpose.msra.mxu0 %v298
        %337 = vmatprep.subr.mxu0 0.0
        %338 = vmatpush1.xpose.msra.mxu0 %v297
        %339 = vmatprep.subr.mxu0 0.0
        %340 = vmatpush1.xpose.msra.mxu0 %v296
        %341 = vmatprep.subr.mxu0 0.0
        %342 = vmatpush1.xpose.msra.mxu0 %v295
        %343 = vmatprep.subr.mxu0 0.0
        %344 = vmatpush1.xpose.msra.mxu0 %v294
        %345 = vmatprep.subr.mxu0 0.0
        %346 = vmatpush1.xpose.msra.mxu0 %v293
        %347 = vmatprep.subr.mxu0 0.0
        %348 = vmatpush2.xpose.msra.mxu0 0.0
        %349 = vmatprep.subr.mxu0 0.0
        %350 = vmatpush2.xpose.msra.mxu0 0.0
        %351 = vmatprep.subr.mxu0 0.0
        %352 = vmatpush2.xpose.msra.mxu0 0.0
        %353 = vmatprep.subr.mxu0 0.0
        %354 = vmatpush2.xpose.msra.mxu0 0.0
        %355 = vmatprep.subr.mxu0 0.0
        %356 = vmatpush2.xpose.msra.mxu0 0.0
        %357 = vmatprep.subr.mxu0 0.0
        %358 = vmatpush2.xpose.msra.mxu0 0.0
        %359 = vmatprep.subr.mxu0 0.0
        %360 = vmatpush2.xpose.msra.mxu0 0.0
        %361 = vmatprep.subr.mxu0 0.0
        %362 = vmatpush2.xpose.msra.mxu0 0.0
        %363 = vmatprep.subr.mxu0 0.0
        %364 = vmatpush2.xpose.msra.mxu0 0.0
        %365 = vmatprep.subr.mxu0 0.0
        %366 = vmatpush2.xpose.msra.mxu0 0.0
        %367 = vmatprep.subr.mxu0 0.0
        %368 = vmatpush2.xpose.msra.mxu0 0.0
        %369 = vmatprep.subr.mxu0 0.0
        %370 = vmatpush2.xpose.msra.mxu0 0.0
        %371 = vmatprep.subr.mxu0 0.0
        %372 = vmatpush2.xpose.msra.mxu0 0.0
        %373 = vmatprep.subr.mxu0 0.0
        %374 = vmatpush2.xpose.msra.mxu0 0.0
        %375 = vmatprep.subr.mxu0 0.0
        %376 = vmatpush2.xpose.msra.mxu0 0.0
        %377 = vmatprep.subr.mxu0 0.0
        %378 = vmatpush2.xpose.msra.mxu0 0.0
        %379 = vmatprep.mubr.f32.mxu0 0.0
        %380 = vmatmul.mubr.f32.gmra.mxu0 %v313
        %v381 = vpop.f32.mrf.mxu0
        %v382 = vadd.f32 %v311, %v381
        %v383 = vpop.f32.mrf.mxu0
        %384 = vmatprep.mubr.f32.mxu0 0.0
        %385 = vmatmul.mubr.f32.gmra.mxu0 %v314
        %v386 = vpop.f32.mrf.mxu0
        %v387 = vadd.f32 %v312, %v386
        %v388 = vpop.f32.mrf.mxu0
        %389 = vdwg.mxu0
        %v390 = vlaneseq
        %v391 = vand.u32 %v390, 127
        %vm392 = vcmp.lt.s32.totalorder %v391, 32
        %v393 = vsel %vm392, %v382, -1e+30
        %v394 = vsel %vm392, %v387, -1e+30
        %395 = vmax.xlane.f32.xlu0 %v393
        %v396 = vpop.xlane.xlu0 %395
        %397 = vmax.xlane.f32.xlu0 %v394
        %v398 = vpop.xlane.xlu0 %397
        %v399 = vsub.f32 %v393, %v396
        %v400 = vsub.f32 %v394, %v398
        %v401 = vmul.f32 %v399, 1.442695
        %v402 = vpow.pop %v401
        %v403 = vmul.f32 %v400, 1.442695
        %v404 = vpow.pop %v403
        %405 = vadd.xlane.f32.xlu0 %v402
        %v406 = vpop.xlane.xlu0 %405
        %407 = vadd.xlane.f32.xlu0 %v404
        %v408 = vpop.xlane.xlu0 %407
        %v409 = vld [vmem:[%s255] sm:$0xff]
        %v410 = vld [vmem:[%s255 + $0x8] sm:$0xff]
        %vm411 = vcmp.ge.u32.totalorder %v409, 685957268
        %vm412 = vcmp.ge.u32.totalorder %v410, 685957268
        %v413 = vsel %vm411, %v402, 0.0
        %v414 = vsel %vm412, %v404, 0.0
        %415 = vmatprep.subr.mxu0 0.0
        %416 = vmatpush1.msra.mxu0 %v308
        %417 = vmatprep.subr.mxu0 0.0
        %418 = vmatpush1.msra.mxu0 %v307
        %419 = vmatprep.subr.mxu0 0.0
        %420 = vmatpush1.msra.mxu0 %v306
        %421 = vmatprep.subr.mxu0 0.0
        %422 = vmatpush1.msra.mxu0 %v305
        %423 = vmatprep.subr.mxu0 0.0
        %424 = vmatpush1.msra.mxu0 %v304
        %425 = vmatprep.subr.mxu0 0.0
        %426 = vmatpush1.msra.mxu0 %v303
        %427 = vmatprep.subr.mxu0 0.0
        %428 = vmatpush1.msra.mxu0 %v302
        %429 = vmatprep.subr.mxu0 0.0
        %430 = vmatpush1.msra.mxu0 %v301
        %431 = vmatprep.subr.mxu0 0.0
        %432 = vmatpush1.msra.mxu0 %v300
        %433 = vmatprep.subr.mxu0 0.0
        %434 = vmatpush1.msra.mxu0 %v299
        %435 = vmatprep.subr.mxu0 0.0
        %436 = vmatpush1.msra.mxu0 %v298
        %437 = vmatprep.subr.mxu0 0.0
        %438 = vmatpush1.msra.mxu0 %v297
        %439 = vmatprep.subr.mxu0 0.0
        %440 = vmatpush1.msra.mxu0 %v296
        %441 = vmatprep.subr.mxu0 0.0
        %442 = vmatpush1.msra.mxu0 %v295
        %443 = vmatprep.subr.mxu0 0.0
        %444 = vmatpush1.msra.mxu0 %v294
        %445 = vmatprep.subr.mxu0 0.0
        %446 = vmatpush1.msra.mxu0 %v293
        %447 = vmatprep.subr.mxu0 0.0
        %448 = vmatpush2.msra.mxu0 0.0
        %449 = vmatprep.subr.mxu0 0.0
        %450 = vmatpush2.msra.mxu0 0.0
        %451 = vmatprep.subr.mxu0 0.0
        %452 = vmatpush2.msra.mxu0 0.0
        %453 = vmatprep.subr.mxu0 0.0
        %454 = vmatpush2.msra.mxu0 0.0
        %455 = vmatprep.subr.mxu0 0.0
        %456 = vmatpush2.msra.mxu0 0.0
        %457 = vmatprep.subr.mxu0 0.0
        %458 = vmatpush2.msra.mxu0 0.0
        %459 = vmatprep.subr.mxu0 0.0
        %460 = vmatpush2.msra.mxu0 0.0
        %461 = vmatprep.subr.mxu0 0.0
        %462 = vmatpush2.msra.mxu0 0.0
        %463 = vmatprep.subr.mxu0 0.0
        %464 = vmatpush2.msra.mxu0 0.0
        %465 = vmatprep.subr.mxu0 0.0
        %466 = vmatpush2.msra.mxu0 0.0
        %467 = vmatprep.subr.mxu0 0.0
        %468 = vmatpush2.msra.mxu0 0.0
        %469 = vmatprep.subr.mxu0 0.0
        %470 = vmatpush2.msra.mxu0 0.0
        %471 = vmatprep.subr.mxu0 0.0
        %472 = vmatpush2.msra.mxu0 0.0
        %473 = vmatprep.subr.mxu0 0.0
        %474 = vmatpush2.msra.mxu0 0.0
        %475 = vmatprep.subr.mxu0 0.0
        %476 = vmatpush2.msra.mxu0 0.0
        %477 = vmatprep.subr.mxu0 0.0
        %478 = vmatpush2.msra.mxu0 0.0
        %479 = vmatprep.mubr.f32.mxu0 0.0
        %480 = vmatmul.mubr.f32.gmra.mxu0 %v413
        %v481 = vpop.f32.mrf.mxu0
        %v482 = vadd.f32 0.0, %v481
        %v483 = vpop.f32.mrf.mxu0
        %484 = vmatprep.mubr.f32.mxu0 0.0
        %485 = vmatmul.mubr.f32.gmra.mxu0 %v414
        %v486 = vpop.f32.mrf.mxu0
        %v487 = vadd.f32 0.0, %v486
        %v488 = vpop.f32.mrf.mxu0
        %489 = vdwg.mxu0
        %v490 = vrcp.pop %v406
        %v491 = vmul.f32 1.190068, %v490
        %v492 = vrcp.pop %v408
        %v493 = vmul.f32 1.190068, %v492
        %v494 = vmul.f32 %v482, %v491
        %v495 = vmul.f32 %v487, %v493
        %496 = vst [vmem:[%s287] sm:$0xff] %v494
        %497 = vst [vmem:[%s287 + $0x8] sm:$0xff] %v495
        %s498 = sand.u32 %s127, 1
        %s499 = scalar_lea.sflag [#allocation4], %s498
        %s500 = sand.u32 %s127, 1
        %s501 = smul.addr %s500, 16
        %s502 = scalar_lea.vmem [#allocation8], %s501
        // Predicated region
        $region45: #{tpu_custom_call.1} parent=31 // pred_check
          %p503 = pneg %p137
        $region46: #{tpu_custom_call.1} parent=31 // pred_check_branch
          %505 = sbr.rel (%p503) target = $region48
        $region47: #{tpu_custom_call.1} parent=31 // pred_region
          %s506 = smul.u32 2, %s28
          %s508 = ssub.s32 256, 256
          %509 = vsyncadd %s499, %s508
          %s510 = smul.addr %s27, 2
          %s511 = sadd.s32 %s506, %s510
          %s512 = smul.addr %s511, 128
          %s513 = scalar_lea.hbm %s3, %s512
          %s514 = sshll.u32 %s502, 4
          %s515 = int_to_ptr.vmem [resolvable:$true] %s514
          %520 = dma.vmem_to_hbm [thread:$0]  %s515, 256, %s513, %s499, 128, 128, 8
        $region48: #{tpu_custom_call.1} parent=31 // pred_fallthru
          _
      $region32: #{tpu_custom_call.1} parent=5 // pred_fallthru
        _
      %p521 = scmp.le.s32.totalorder 2, %s18
      // Predicated region
      $region49: #{tpu_custom_call.1} parent=5 // pred_check
        %p522 = pneg %p521
      $region50: #{tpu_custom_call.1} parent=5 // pred_check_branch
        %524 = sbr.rel (%p522) target = $region52
      $region51: #{tpu_custom_call.1} parent=5 // pred_region
        %s525 = ssub.s32 %s18, 2
        // Predicated region
        $region53: #{tpu_custom_call.1} parent=51 // pred_check
          %p526 = pneg %p143
        $region54: #{tpu_custom_call.1} parent=51 // pred_check_branch
          %528 = sbr.rel (%p526) target = $region56
        $region55: #{tpu_custom_call.1} parent=51 // pred_region
          %s529 = sand.u32 %s128, 1
          %s530 = scalar_lea.sflag [#allocation4], %s529
          %s531 = sand.u32 %s128, 1
          %s532 = smul.addr %s531, 16
          %s533 = scalar_lea.vmem [#allocation8], %s532
          %534 = dma.done %s530, 256
        $region56: #{tpu_custom_call.1} parent=51 // pred_fallthru
          _
      $region52: #{tpu_custom_call.1} parent=5 // pred_fallthru
        _
    $region6: #{tpu_custom_call.1} parent=1 // loop_footer
      %s22 = sadd.s32 1, %s18
    $region7: #{tpu_custom_call.1} parent=1 // loop_footer_branch
      %17 = sbr.rel target = $region3
    $region8: #{tpu_custom_call.1} parent=1 // loop_exit
      _
    %535 = vsyncpa [#allocation3], 1
    %s536 = scalar_lea.sflag [#allocation3], 1
    %537 = vsyncpa %s536, 1
    %538 = vsyncpa [#allocation6], 1
    %s539 = scalar_lea.sflag [#allocation6], 1
    %540 = vsyncpa %s539, 1
    %541 = vsyncpa [#allocation4], 1
    %s542 = scalar_lea.sflag [#allocation4], 1
    %543 = vsyncpa %s542, 1

</llo_original>
